<compile_context>
chip_gen: v5e
topology: v5e:2x2
jax: 0.10.0
libtpu: 0.0.40
codegen_flags: <defaults>
</compile_context>

<pallas_src>
import jax
import jax.numpy as jnp
from jax import lax
from jax.experimental import pallas as pl
from jax.experimental.pallas import tpu as pltpu

INPUT_SIZE = 6
HIDDEN_SIZE = 64
NUM_LAYERS = 2          # hard-wired as two explicit fused layers in the kernel
PREDICT_SIZE = 10


def rnn_kernel(x_ref, w_ref, fc_ref, out_ref, xproj_ref):
    """Whole sequence in one invocation; recurrence fully unrolled in-kernel.

    x_ref:     (T*B, I_pad)  time-major, batch/feature padded input
    w_ref:     (I_pad + 3H + 2, H) packed [Wih0; Whh0; Wih1; Whh1; b0; b1]
    fc_ref:    (H + 1, N_pad) packed [Wfc; bfc], N_pad lane-dense (128)
    out_ref:   (B, N_pad)
    xproj_ref: (T*B, H) scratch for the hoisted layer-0 projection
    """
    B = out_ref.shape[0]
    TB, I_pad = x_ref.shape
    T = TB // B
    H = w_ref.shape[1]

    # ---- one-time prologue (outside the recurrence) ------------------------
    # Carve the packed slab with static sublane slices; cast matmul operands to
    # bf16 (MXU-native everywhere); biases stay f32 (v5e VPU/EUP have no bf16).
    wih0 = w_ref[0:I_pad, :].astype(jnp.bfloat16)
    whh0 = w_ref[I_pad:I_pad + H, :].astype(jnp.bfloat16)
    wih1 = w_ref[I_pad + H:I_pad + 2 * H, :].astype(jnp.bfloat16)
    whh1 = w_ref[I_pad + 2 * H:I_pad + 3 * H, :].astype(jnp.bfloat16)
    b0 = w_ref[I_pad + 3 * H:I_pad + 3 * H + 1, :]                  # (1, H) f32
    b1 = jnp.broadcast_to(                                          # hoisted
        w_ref[I_pad + 3 * H + 1:I_pad + 3 * H + 2, :], (B, H))

    # Hoisted, batched layer-0 input projection: ONE (T*B, I_pad)x(I_pad, H)
    # MXU pass instead of T tiny M=B passes on the serial critical path.
    # b_ih0 + b_hh0 folded in here.
    xproj_ref[...] = (
        jnp.dot(x_ref[...].astype(jnp.bfloat16), wih0,
                preferred_element_type=jnp.float32) + b0)

    # ---- serial recurrence (hidden states live in vregs) -------------------
    def step(t, carry):
        h1, h2 = carry
        xp = xproj_ref[pl.ds(pl.multiple_of(t * B, B), B), :]       # (B, H)
        # layer 0: tanh(xproj[t] + h1 @ Whh0)
        h1n = jnp.tanh(
            xp + jnp.dot(h1.astype(jnp.bfloat16), whh0,
                         preferred_element_type=jnp.float32))
        # layer 1: two independent dots (no lane concat); the h2 @ Whh1 term
        # depends only on h2(t-1), so it can overlap layer 0's matmul + tanh.
        h2n = jnp.tanh(
            jnp.dot(h1n.astype(jnp.bfloat16), wih1,
                    preferred_element_type=jnp.float32)
            + jnp.dot(h2.astype(jnp.bfloat16), whh1,
                      preferred_element_type=jnp.float32)
            + b1)
        return (h1n, h2n)

    h_init = jnp.zeros((B, H), jnp.float32)
    # Full unroll is right for T=8; for windows of hundreds of steps switch to
    # a partial unroll (e.g. unroll=4) to bound vreg live ranges.
    _, h2 = lax.fori_loop(0, T, step, (h_init, h_init), unroll=True)

    # ---- FC on the last timestep; lane-dense (N padded to 128) store -------
    wfc = fc_ref[0:H, :].astype(jnp.bfloat16)
    bfc = fc_ref[H:H + 1, :]
    out_ref[...] = (
        jnp.dot(h2.astype(jnp.bfloat16), wfc,
                preferred_element_type=jnp.float32) + bfc)


def vanilla_rnn_forward(x, params):
    """x: (batch, window, input_size) float32 -> (batch, predict_size, input_size)."""
    B, T, I = x.shape
    H = HIDDEN_SIZE
    PI = PREDICT_SIZE * I

    # Pad batch to a multiple of 8 sublanes, features to a multiple of 8,
    # FC output to a lane-dense multiple of 128.
    B_pad = max(8, ((B + 7) // 8) * 8)
    I_pad = max(8, ((I + 7) // 8) * 8)
    N_pad = max(128, ((PI + 127) // 128) * 128)

    (wih0, whh0, bih0, bhh0, wih1, whh1, bih1, bhh1, wfc, bfc) = params

    # Time-major, zero-padded, flattened input slab (T*B_pad, I_pad).
    x_tm = jnp.transpose(x, (1, 0, 2))
    x_tm = jnp.pad(x_tm, ((0, 0), (0, B_pad - B), (0, I_pad - I)))
    x_flat = x_tm.reshape(T * B_pad, I_pad)

    # Packed RNN slab: [Wih0(pad); Whh0; Wih1; Whh1; b0; b1]  -> (I_pad+3H+2, H)
    wih0_p = jnp.pad(wih0, ((0, I_pad - I), (0, 0)))
    w_slab = jnp.concatenate(
        [wih0_p, whh0, wih1, whh1, bih0 + bhh0, bih1 + bhh1], axis=0)

    # Packed, lane-dense FC slab: [Wfc(pad); bfc(pad)] -> (H+1, N_pad)
    wfc_p = jnp.pad(wfc, ((0, 0), (0, N_pad - PI)))
    bfc_p = jnp.pad(bfc, ((0, 0), (0, N_pad - PI)))
    fc_slab = jnp.concatenate([wfc_p, bfc_p], axis=0)

    out = pl.pallas_call(
        rnn_kernel,
        out_shape=jax.ShapeDtypeStruct((B_pad, N_pad), jnp.float32),
        in_specs=[pl.BlockSpec(memory_space=pltpu.MemorySpace.VMEM)] * 3,
        out_specs=pl.BlockSpec(memory_space=pltpu.MemorySpace.VMEM),
        scratch_shapes=[pltpu.VMEM((T * B_pad, H), jnp.float32)],
    )(x_flat, w_slab, fc_slab)

    return out[:B, :PI].reshape(B, PREDICT_SIZE, I)


def init_params(key):
    """Deterministic init mimicking PyTorch's U(-1/sqrt(H), 1/sqrt(H)).
    Weights are stored transposed (in_dim, out_dim) so the kernel does x @ W."""
    H, I, PI = HIDDEN_SIZE, INPUT_SIZE, PREDICT_SIZE * INPUT_SIZE
    k = 1.0 / jnp.sqrt(jnp.float32(H))
    keys = jax.random.split(key, 10)
    u = lambda kk, shape: jax.random.uniform(kk, shape, jnp.float32, -k, k)
    wih0 = u(keys[0], (I, H))
    whh0 = u(keys[1], (H, H))
    bih0 = u(keys[2], (1, H))
    bhh0 = u(keys[3], (1, H))
    wih1 = u(keys[4], (H, H))
    whh1 = u(keys[5], (H, H))
    bih1 = u(keys[6], (1, H))
    bhh1 = u(keys[7], (1, H))
    wfc = u(keys[8], (H, PI))
    bfc = u(keys[9], (1, PI))
    return (wih0, whh0, bih0, bhh0, wih1, whh1, bih1, bhh1, wfc, bfc)


def ref_forward(x, params):
    """Pure-JAX f32 reference matching torch.nn.RNN(tanh, num_layers=2, batch_first) + fc."""
    (wih0, whh0, bih0, bhh0, wih1, whh1, bih1, bhh1, wfc, bfc) = params
    B, T, I = x.shape
    h1 = jnp.zeros((B, HIDDEN_SIZE), jnp.float32)
    h2 = jnp.zeros((B, HIDDEN_SIZE), jnp.float32)
    for t in range(T):
        x_t = x[:, t, :]
        h1 = jnp.tanh(x_t @ wih0 + bih0 + h1 @ whh0 + bhh0)
        h2 = jnp.tanh(h1 @ wih1 + bih1 + h2 @ whh1 + bhh1)
    out = h2 @ wfc + bfc
    return out.reshape(B, PREDICT_SIZE, I)


if __name__ == "__main__":
    key = jax.random.PRNGKey(0)
    k_x, k_p = jax.random.split(key)

    batch, window = 2, 8
    x = jax.random.normal(k_x, (batch, window, INPUT_SIZE), jnp.float32)
    params = init_params(k_p)

    out = jax.jit(vanilla_rnn_forward)(x, params)
    out = jax.block_until_ready(out)

    ref = ref_forward(x, params)
    assert out.shape == (batch, PREDICT_SIZE, INPUT_SIZE)
    # Tolerance relaxed vs the pure-f32 version because matmul operands are
    # bf16 (per perf review); accumulation/bias/tanh remain f32, so the error
    # stays well below 1e-2 over the 8-step recurrence.
    assert jnp.allclose(out, ref, atol=2e-2, rtol=2e-2), "mismatch vs JAX reference"

    print("KERNEL_OK")
</pallas_src>

<mosaic_0001>
module attributes {stable_mosaic.version = 11 : i64} {
  func.func @rnn_kernel(%arg0: memref<64x8xf32, #tpu.memory_space<vmem>>, %arg1: memref<202x64xf32, #tpu.memory_space<vmem>>, %arg2: memref<65x128xf32, #tpu.memory_space<vmem>>, %arg3: memref<8x128xf32, #tpu.memory_space<vmem>>, %arg4: memref<64x64xf32, #tpu.memory_space<vmem>>) attributes {dimension_semantics = [], scalar_prefetch = 0 : i64, scratch_operands = 1 : i64, tpu.core_type = #tpu.core_type<tc>} {
    %c0 = arith.constant 0 : index
    %c0_0 = arith.constant 0 : index
    %0 = vector.load %arg1[%c0, %c0_0] : memref<202x64xf32, #tpu.memory_space<vmem>>, vector<8x64xf32>
    %1 = arith.truncf %0 : vector<8x64xf32> to vector<8x64xbf16>
    %c8 = arith.constant 8 : index
    %c0_1 = arith.constant 0 : index
    %2 = vector.load %arg1[%c8, %c0_1] : memref<202x64xf32, #tpu.memory_space<vmem>>, vector<64x64xf32>
    %3 = arith.truncf %2 : vector<64x64xf32> to vector<64x64xbf16>
    %c72 = arith.constant 72 : index
    %c0_2 = arith.constant 0 : index
    %4 = vector.load %arg1[%c72, %c0_2] : memref<202x64xf32, #tpu.memory_space<vmem>>, vector<64x64xf32>
    %5 = arith.truncf %4 : vector<64x64xf32> to vector<64x64xbf16>
    %c136 = arith.constant 136 : index
    %c0_3 = arith.constant 0 : index
    %6 = vector.load %arg1[%c136, %c0_3] : memref<202x64xf32, #tpu.memory_space<vmem>>, vector<64x64xf32>
    %7 = arith.truncf %6 : vector<64x64xf32> to vector<64x64xbf16>
    %c200 = arith.constant 200 : index
    %c0_4 = arith.constant 0 : index
    %8 = vector.load %arg1[%c200, %c0_4] : memref<202x64xf32, #tpu.memory_space<vmem>>, vector<1x64xf32>
    %c201 = arith.constant 201 : index
    %c0_5 = arith.constant 0 : index
    %9 = vector.load %arg1[%c201, %c0_5] : memref<202x64xf32, #tpu.memory_space<vmem>>, vector<1x64xf32>
    %10 = vector.shape_cast %9 : vector<1x64xf32> to vector<1x64xf32>
    %11 = vector.broadcast %10 : vector<1x64xf32> to vector<8x64xf32>
    %c0_6 = arith.constant 0 : index
    %c0_7 = arith.constant 0 : index
    %12 = vector.load %arg0[%c0_6, %c0_7] : memref<64x8xf32, #tpu.memory_space<vmem>>, vector<64x8xf32>
    %13 = arith.truncf %12 : vector<64x8xf32> to vector<64x8xbf16>
    %cst = arith.constant dense<0.000000e+00> : vector<64x64xf32>
    %14 = tpu.matmul %13, %1, %cst {dimension_numbers = #tpu.dot_dimension_numbers<[1], [0], [0], [1], [0, 0, 1, 1], [], []>} : vector<64x8xbf16>, vector<8x64xbf16>, vector<64x64xf32> -> vector<64x64xf32>
    %15 = vector.broadcast %8 : vector<1x64xf32> to vector<64x64xf32>
    %16 = arith.addf %14, %15 : vector<64x64xf32>
    %c0_8 = arith.constant 0 : index
    %c0_9 = arith.constant 0 : index
    %17 = vector.load %arg4[%c0_8, %c0_9] : memref<64x64xf32, #tpu.memory_space<vmem>>, vector<64x64xf32>
    tpu.vector_store %arg4[%c0_8, %c0_9], %16 {strides = array<i32>} : memref<64x64xf32, #tpu.memory_space<vmem>>, vector<64x64xf32>,
    %cst_10 = arith.constant 0.000000e+00 : f32
    %18 = vector.broadcast %cst_10 : f32 to vector<8x64xf32>
    %c0_i32 = arith.constant 0 : i32
    %c8_i32 = arith.constant 8 : i32
    %19 = arith.muli %c0_i32, %c8_i32 : i32
    %20 = tpu.assume_multiple %19, 8 : i32
    %21 = arith.index_cast %20 : i32 to index
    %c0_11 = arith.constant 0 : index
    %22 = vector.load %arg4[%21, %c0_11] : memref<64x64xf32, #tpu.memory_space<vmem>>, vector<8x64xf32>
    %23 = arith.truncf %18 : vector<8x64xf32> to vector<8x64xbf16>
    %cst_12 = arith.constant dense<0.000000e+00> : vector<8x64xf32>
    %24 = tpu.matmul %23, %3, %cst_12 {dimension_numbers = #tpu.dot_dimension_numbers<[1], [0], [0], [1], [0, 0, 1, 1], [], []>} : vector<8x64xbf16>, vector<64x64xbf16>, vector<8x64xf32> -> vector<8x64xf32>
    %25 = arith.addf %22, %24 : vector<8x64xf32>
    %26 = math.tanh %25 : vector<8x64xf32>
    %27 = arith.truncf %26 : vector<8x64xf32> to vector<8x64xbf16>
    %cst_13 = arith.constant dense<0.000000e+00> : vector<8x64xf32>
    %28 = tpu.matmul %27, %5, %cst_13 {dimension_numbers = #tpu.dot_dimension_numbers<[1], [0], [0], [1], [0, 0, 1, 1], [], []>} : vector<8x64xbf16>, vector<64x64xbf16>, vector<8x64xf32> -> vector<8x64xf32>
    %29 = arith.truncf %18 : vector<8x64xf32> to vector<8x64xbf16>
    %cst_14 = arith.constant dense<0.000000e+00> : vector<8x64xf32>
    %30 = tpu.matmul %29, %7, %cst_14 {dimension_numbers = #tpu.dot_dimension_numbers<[1], [0], [0], [1], [0, 0, 1, 1], [], []>} : vector<8x64xbf16>, vector<64x64xbf16>, vector<8x64xf32> -> vector<8x64xf32>
    %31 = arith.addf %28, %30 : vector<8x64xf32>
    %32 = arith.addf %31, %11 : vector<8x64xf32>
    %33 = math.tanh %32 : vector<8x64xf32>
    %c1_i32 = arith.constant 1 : i32
    %c8_i32_15 = arith.constant 8 : i32
    %34 = arith.muli %c1_i32, %c8_i32_15 : i32
    %35 = tpu.assume_multiple %34, 8 : i32
    %36 = arith.index_cast %35 : i32 to index
    %c0_16 = arith.constant 0 : index
    %37 = vector.load %arg4[%36, %c0_16] : memref<64x64xf32, #tpu.memory_space<vmem>>, vector<8x64xf32>
    %38 = arith.truncf %26 : vector<8x64xf32> to vector<8x64xbf16>
    %cst_17 = arith.constant dense<0.000000e+00> : vector<8x64xf32>
    %39 = tpu.matmul %38, %3, %cst_17 {dimension_numbers = #tpu.dot_dimension_numbers<[1], [0], [0], [1], [0, 0, 1, 1], [], []>} : vector<8x64xbf16>, vector<64x64xbf16>, vector<8x64xf32> -> vector<8x64xf32>
    %40 = arith.addf %37, %39 : vector<8x64xf32>
    %41 = math.tanh %40 : vector<8x64xf32>
    %42 = arith.truncf %41 : vector<8x64xf32> to vector<8x64xbf16>
    %cst_18 = arith.constant dense<0.000000e+00> : vector<8x64xf32>
    %43 = tpu.matmul %42, %5, %cst_18 {dimension_numbers = #tpu.dot_dimension_numbers<[1], [0], [0], [1], [0, 0, 1, 1], [], []>} : vector<8x64xbf16>, vector<64x64xbf16>, vector<8x64xf32> -> vector<8x64xf32>
    %44 = arith.truncf %33 : vector<8x64xf32> to vector<8x64xbf16>
    %cst_19 = arith.constant dense<0.000000e+00> : vector<8x64xf32>
    %45 = tpu.matmul %44, %7, %cst_19 {dimension_numbers = #tpu.dot_dimension_numbers<[1], [0], [0], [1], [0, 0, 1, 1], [], []>} : vector<8x64xbf16>, vector<64x64xbf16>, vector<8x64xf32> -> vector<8x64xf32>
    %46 = arith.addf %43, %45 : vector<8x64xf32>
    %47 = arith.addf %46, %11 : vector<8x64xf32>
    %48 = math.tanh %47 : vector<8x64xf32>
    %c2_i32 = arith.constant 2 : i32
    %c8_i32_20 = arith.constant 8 : i32
    %49 = arith.muli %c2_i32, %c8_i32_20 : i32
    %50 = tpu.assume_multiple %49, 8 : i32
    %51 = arith.index_cast %50 : i32 to index
    %c0_21 = arith.constant 0 : index
    %52 = vector.load %arg4[%51, %c0_21] : memref<64x64xf32, #tpu.memory_space<vmem>>, vector<8x64xf32>
    %53 = arith.truncf %41 : vector<8x64xf32> to vector<8x64xbf16>
    %cst_22 = arith.constant dense<0.000000e+00> : vector<8x64xf32>
    %54 = tpu.matmul %53, %3, %cst_22 {dimension_numbers = #tpu.dot_dimension_numbers<[1], [0], [0], [1], [0, 0, 1, 1], [], []>} : vector<8x64xbf16>, vector<64x64xbf16>, vector<8x64xf32> -> vector<8x64xf32>
    %55 = arith.addf %52, %54 : vector<8x64xf32>
    %56 = math.tanh %55 : vector<8x64xf32>
    %57 = arith.truncf %56 : vector<8x64xf32> to vector<8x64xbf16>
    %cst_23 = arith.constant dense<0.000000e+00> : vector<8x64xf32>
    %58 = tpu.matmul %57, %5, %cst_23 {dimension_numbers = #tpu.dot_dimension_numbers<[1], [0], [0], [1], [0, 0, 1, 1], [], []>} : vector<8x64xbf16>, vector<64x64xbf16>, vector<8x64xf32> -> vector<8x64xf32>
    %59 = arith.truncf %48 : vector<8x64xf32> to vector<8x64xbf16>
    %cst_24 = arith.constant dense<0.000000e+00> : vector<8x64xf32>
    %60 = tpu.matmul %59, %7, %cst_24 {dimension_numbers = #tpu.dot_dimension_numbers<[1], [0], [0], [1], [0, 0, 1, 1], [], []>} : vector<8x64xbf16>, vector<64x64xbf16>, vector<8x64xf32> -> vector<8x64xf32>
    %61 = arith.addf %58, %60 : vector<8x64xf32>
    %62 = arith.addf %61, %11 : vector<8x64xf32>
    %63 = math.tanh %62 : vector<8x64xf32>
    %c3_i32 = arith.constant 3 : i32
    %c8_i32_25 = arith.constant 8 : i32
    %64 = arith.muli %c3_i32, %c8_i32_25 : i32
    %65 = tpu.assume_multiple %64, 8 : i32
    %66 = arith.index_cast %65 : i32 to index
    %c0_26 = arith.constant 0 : index
    %67 = vector.load %arg4[%66, %c0_26] : memref<64x64xf32, #tpu.memory_space<vmem>>, vector<8x64xf32>
    %68 = arith.truncf %56 : vector<8x64xf32> to vector<8x64xbf16>
    %cst_27 = arith.constant dense<0.000000e+00> : vector<8x64xf32>
    %69 = tpu.matmul %68, %3, %cst_27 {dimension_numbers = #tpu.dot_dimension_numbers<[1], [0], [0], [1], [0, 0, 1, 1], [], []>} : vector<8x64xbf16>, vector<64x64xbf16>, vector<8x64xf32> -> vector<8x64xf32>
    %70 = arith.addf %67, %69 : vector<8x64xf32>
    %71 = math.tanh %70 : vector<8x64xf32>
    %72 = arith.truncf %71 : vector<8x64xf32> to vector<8x64xbf16>
    %cst_28 = arith.constant dense<0.000000e+00> : vector<8x64xf32>
    %73 = tpu.matmul %72, %5, %cst_28 {dimension_numbers = #tpu.dot_dimension_numbers<[1], [0], [0], [1], [0, 0, 1, 1], [], []>} : vector<8x64xbf16>, vector<64x64xbf16>, vector<8x64xf32> -> vector<8x64xf32>
    %74 = arith.truncf %63 : vector<8x64xf32> to vector<8x64xbf16>
    %cst_29 = arith.constant dense<0.000000e+00> : vector<8x64xf32>
    %75 = tpu.matmul %74, %7, %cst_29 {dimension_numbers = #tpu.dot_dimension_numbers<[1], [0], [0], [1], [0, 0, 1, 1], [], []>} : vector<8x64xbf16>, vector<64x64xbf16>, vector<8x64xf32> -> vector<8x64xf32>
    %76 = arith.addf %73, %75 : vector<8x64xf32>
    %77 = arith.addf %76, %11 : vector<8x64xf32>
    %78 = math.tanh %77 : vector<8x64xf32>
    %c4_i32 = arith.constant 4 : i32
    %c8_i32_30 = arith.constant 8 : i32
    %79 = arith.muli %c4_i32, %c8_i32_30 : i32
    %80 = tpu.assume_multiple %79, 8 : i32
    %81 = arith.index_cast %80 : i32 to index
    %c0_31 = arith.constant 0 : index
    %82 = vector.load %arg4[%81, %c0_31] : memref<64x64xf32, #tpu.memory_space<vmem>>, vector<8x64xf32>
    %83 = arith.truncf %71 : vector<8x64xf32> to vector<8x64xbf16>
    %cst_32 = arith.constant dense<0.000000e+00> : vector<8x64xf32>
    %84 = tpu.matmul %83, %3, %cst_32 {dimension_numbers = #tpu.dot_dimension_numbers<[1], [0], [0], [1], [0, 0, 1, 1], [], []>} : vector<8x64xbf16>, vector<64x64xbf16>, vector<8x64xf32> -> vector<8x64xf32>
    %85 = arith.addf %82, %84 : vector<8x64xf32>
    %86 = math.tanh %85 : vector<8x64xf32>
    %87 = arith.truncf %86 : vector<8x64xf32> to vector<8x64xbf16>
    %cst_33 = arith.constant dense<0.000000e+00> : vector<8x64xf32>
    %88 = tpu.matmul %87, %5, %cst_33 {dimension_numbers = #tpu.dot_dimension_numbers<[1], [0], [0], [1], [0, 0, 1, 1], [], []>} : vector<8x64xbf16>, vector<64x64xbf16>, vector<8x64xf32> -> vector<8x64xf32>
    %89 = arith.truncf %78 : vector<8x64xf32> to vector<8x64xbf16>
    %cst_34 = arith.constant dense<0.000000e+00> : vector<8x64xf32>
    %90 = tpu.matmul %89, %7, %cst_34 {dimension_numbers = #tpu.dot_dimension_numbers<[1], [0], [0], [1], [0, 0, 1, 1], [], []>} : vector<8x64xbf16>, vector<64x64xbf16>, vector<8x64xf32> -> vector<8x64xf32>
    %91 = arith.addf %88, %90 : vector<8x64xf32>
    %92 = arith.addf %91, %11 : vector<8x64xf32>
    %93 = math.tanh %92 : vector<8x64xf32>
    %c5_i32 = arith.constant 5 : i32
    %c8_i32_35 = arith.constant 8 : i32
    %94 = arith.muli %c5_i32, %c8_i32_35 : i32
    %95 = tpu.assume_multiple %94, 8 : i32
    %96 = arith.index_cast %95 : i32 to index
    %c0_36 = arith.constant 0 : index
    %97 = vector.load %arg4[%96, %c0_36] : memref<64x64xf32, #tpu.memory_space<vmem>>, vector<8x64xf32>
    %98 = arith.truncf %86 : vector<8x64xf32> to vector<8x64xbf16>
    %cst_37 = arith.constant dense<0.000000e+00> : vector<8x64xf32>
    %99 = tpu.matmul %98, %3, %cst_37 {dimension_numbers = #tpu.dot_dimension_numbers<[1], [0], [0], [1], [0, 0, 1, 1], [], []>} : vector<8x64xbf16>, vector<64x64xbf16>, vector<8x64xf32> -> vector<8x64xf32>
    %100 = arith.addf %97, %99 : vector<8x64xf32>
    %101 = math.tanh %100 : vector<8x64xf32>
    %102 = arith.truncf %101 : vector<8x64xf32> to vector<8x64xbf16>
    %cst_38 = arith.constant dense<0.000000e+00> : vector<8x64xf32>
    %103 = tpu.matmul %102, %5, %cst_38 {dimension_numbers = #tpu.dot_dimension_numbers<[1], [0], [0], [1], [0, 0, 1, 1], [], []>} : vector<8x64xbf16>, vector<64x64xbf16>, vector<8x64xf32> -> vector<8x64xf32>
    %104 = arith.truncf %93 : vector<8x64xf32> to vector<8x64xbf16>
    %cst_39 = arith.constant dense<0.000000e+00> : vector<8x64xf32>
    %105 = tpu.matmul %104, %7, %cst_39 {dimension_numbers = #tpu.dot_dimension_numbers<[1], [0], [0], [1], [0, 0, 1, 1], [], []>} : vector<8x64xbf16>, vector<64x64xbf16>, vector<8x64xf32> -> vector<8x64xf32>
    %106 = arith.addf %103, %105 : vector<8x64xf32>
    %107 = arith.addf %106, %11 : vector<8x64xf32>
    %108 = math.tanh %107 : vector<8x64xf32>
    %c6_i32 = arith.constant 6 : i32
    %c8_i32_40 = arith.constant 8 : i32
    %109 = arith.muli %c6_i32, %c8_i32_40 : i32
    %110 = tpu.assume_multiple %109, 8 : i32
    %111 = arith.index_cast %110 : i32 to index
    %c0_41 = arith.constant 0 : index
    %112 = vector.load %arg4[%111, %c0_41] : memref<64x64xf32, #tpu.memory_space<vmem>>, vector<8x64xf32>
    %113 = arith.truncf %101 : vector<8x64xf32> to vector<8x64xbf16>
    %cst_42 = arith.constant dense<0.000000e+00> : vector<8x64xf32>
    %114 = tpu.matmul %113, %3, %cst_42 {dimension_numbers = #tpu.dot_dimension_numbers<[1], [0], [0], [1], [0, 0, 1, 1], [], []>} : vector<8x64xbf16>, vector<64x64xbf16>, vector<8x64xf32> -> vector<8x64xf32>
    %115 = arith.addf %112, %114 : vector<8x64xf32>
    %116 = math.tanh %115 : vector<8x64xf32>
    %117 = arith.truncf %116 : vector<8x64xf32> to vector<8x64xbf16>
    %cst_43 = arith.constant dense<0.000000e+00> : vector<8x64xf32>
    %118 = tpu.matmul %117, %5, %cst_43 {dimension_numbers = #tpu.dot_dimension_numbers<[1], [0], [0], [1], [0, 0, 1, 1], [], []>} : vector<8x64xbf16>, vector<64x64xbf16>, vector<8x64xf32> -> vector<8x64xf32>
    %119 = arith.truncf %108 : vector<8x64xf32> to vector<8x64xbf16>
    %cst_44 = arith.constant dense<0.000000e+00> : vector<8x64xf32>
    %120 = tpu.matmul %119, %7, %cst_44 {dimension_numbers = #tpu.dot_dimension_numbers<[1], [0], [0], [1], [0, 0, 1, 1], [], []>} : vector<8x64xbf16>, vector<64x64xbf16>, vector<8x64xf32> -> vector<8x64xf32>
    %121 = arith.addf %118, %120 : vector<8x64xf32>
    %122 = arith.addf %121, %11 : vector<8x64xf32>
    %123 = math.tanh %122 : vector<8x64xf32>
    %c7_i32 = arith.constant 7 : i32
    %c8_i32_45 = arith.constant 8 : i32
    %124 = arith.muli %c7_i32, %c8_i32_45 : i32
    %125 = tpu.assume_multiple %124, 8 : i32
    %126 = arith.index_cast %125 : i32 to index
    %c0_46 = arith.constant 0 : index
    %127 = vector.load %arg4[%126, %c0_46] : memref<64x64xf32, #tpu.memory_space<vmem>>, vector<8x64xf32>
    %128 = arith.truncf %116 : vector<8x64xf32> to vector<8x64xbf16>
    %cst_47 = arith.constant dense<0.000000e+00> : vector<8x64xf32>
    %129 = tpu.matmul %128, %3, %cst_47 {dimension_numbers = #tpu.dot_dimension_numbers<[1], [0], [0], [1], [0, 0, 1, 1], [], []>} : vector<8x64xbf16>, vector<64x64xbf16>, vector<8x64xf32> -> vector<8x64xf32>
    %130 = arith.addf %127, %129 : vector<8x64xf32>
    %131 = math.tanh %130 : vector<8x64xf32>
    %132 = arith.truncf %131 : vector<8x64xf32> to vector<8x64xbf16>
    %cst_48 = arith.constant dense<0.000000e+00> : vector<8x64xf32>
    %133 = tpu.matmul %132, %5, %cst_48 {dimension_numbers = #tpu.dot_dimension_numbers<[1], [0], [0], [1], [0, 0, 1, 1], [], []>} : vector<8x64xbf16>, vector<64x64xbf16>, vector<8x64xf32> -> vector<8x64xf32>
    %134 = arith.truncf %123 : vector<8x64xf32> to vector<8x64xbf16>
    %cst_49 = arith.constant dense<0.000000e+00> : vector<8x64xf32>
    %135 = tpu.matmul %134, %7, %cst_49 {dimension_numbers = #tpu.dot_dimension_numbers<[1], [0], [0], [1], [0, 0, 1, 1], [], []>} : vector<8x64xbf16>, vector<64x64xbf16>, vector<8x64xf32> -> vector<8x64xf32>
    %136 = arith.addf %133, %135 : vector<8x64xf32>
    %137 = arith.addf %136, %11 : vector<8x64xf32>
    %138 = math.tanh %137 : vector<8x64xf32>
    %c8_i32_50 = arith.constant 8 : i32
    %c0_51 = arith.constant 0 : index
    %c0_52 = arith.constant 0 : index
    %139 = vector.load %arg2[%c0_51, %c0_52] : memref<65x128xf32, #tpu.memory_space<vmem>>, vector<64x128xf32>
    %140 = arith.truncf %139 : vector<64x128xf32> to vector<64x128xbf16>
    %c64 = arith.constant 64 : index
    %c0_53 = arith.constant 0 : index
    %141 = vector.load %arg2[%c64, %c0_53] : memref<65x128xf32, #tpu.memory_space<vmem>>, vector<1x128xf32>
    %142 = arith.truncf %138 : vector<8x64xf32> to vector<8x64xbf16>
    %cst_54 = arith.constant dense<0.000000e+00> : vector<8x128xf32>
    %143 = tpu.matmul %142, %140, %cst_54 {dimension_numbers = #tpu.dot_dimension_numbers<[1], [0], [0], [1], [0, 0, 1, 1], [], []>} : vector<8x64xbf16>, vector<64x128xbf16>, vector<8x128xf32> -> vector<8x128xf32>
    %144 = vector.broadcast %141 : vector<1x128xf32> to vector<8x128xf32>
    %145 = arith.addf %143, %144 : vector<8x128xf32>
    %c0_55 = arith.constant 0 : index
    %c0_56 = arith.constant 0 : index
    %146 = vector.load %arg3[%c0_55, %c0_56] : memref<8x128xf32, #tpu.memory_space<vmem>>, vector<8x128xf32>
    tpu.vector_store %arg3[%c0_55, %c0_56], %145 {strides = array<i32>} : memref<8x128xf32, #tpu.memory_space<vmem>>, vector<8x128xf32>,
    return
  }
}

</mosaic_0001>

<llo_original>
// kernel: vanilla_rnn_forward.1
$region0: #{vanilla_rnn_forward.1}
  #allocation0 [shape = 'u32[]', space=smem, size = 0x4, offset = 0x4, fixed_abs, tag = 'smem constant byte address 0x4 - core index']
  #allocation1 [shape = 'u32[72,128]{1,0:T(1,128)}', space=vmem, size = 0x9000, scoped, tag = 'internal scratch']
  #allocation2 [shape = 'f32[64,64]{1,0:T(8,128)}', space=vmem, size = 0x8000, scoped, tag = 'scratch operand']
  %s0 = inlined_call_operand.vmem [shape: f32[64,8], index: 0, kind: input, shape index: {}]
  %s1 = inlined_call_operand.vmem [shape: f32[202,64], index: 1, kind: input, shape index: {}]
  %s2 = inlined_call_operand.vmem [shape: f32[65,128], index: 2, kind: input, shape index: {}]
  %s3 = inlined_call_operand.vmem [shape: f32[8,128], index: 3, kind: output, shape index: {}]
  %s4 = sld [smem:[#allocation0]]
  $region22: #{vanilla_rnn_forward.1} parent=0
    _
  %s6 = ssub.s32 1, %s4
  %s7 = scalar_select 0, %s6, %s4
  // Predicated region
  $region2: #{vanilla_rnn_forward.1} parent=0 // pred_check
    _
  $region3: #{vanilla_rnn_forward.1} parent=0 // pred_check_branch
    %9 = sbr.rel (0) target = $region5
  $region4: #{vanilla_rnn_forward.1} parent=0 // pred_region
    _
  $region5: #{vanilla_rnn_forward.1} parent=0 // pred_fallthru
    _
  // Predicated region
  $region6: #{vanilla_rnn_forward.1} parent=0 // pred_check
    _
  $region7: #{vanilla_rnn_forward.1} parent=0 // pred_check_branch
    %11 = sbr.rel (0) target = $region9
  $region8: #{vanilla_rnn_forward.1} parent=0 // pred_region
    _
  $region9: #{vanilla_rnn_forward.1} parent=0 // pred_fallthru
    _
  // Predicated region
  $region10: #{vanilla_rnn_forward.1} parent=0 // pred_check
    _
  $region11: #{vanilla_rnn_forward.1} parent=0 // pred_check_branch
    %13 = sbr.rel (0) target = $region13
  $region12: #{vanilla_rnn_forward.1} parent=0 // pred_region
    _
  $region13: #{vanilla_rnn_forward.1} parent=0 // pred_fallthru
    _
  %v15 = vld [vmem:[%s1] sm:$0xff]
  %v16 = vpack.c.bf16 %v15, %v15
  %v17 = vld [vmem:[%s1 + $0x8] sm:$0xff]
  %v18 = vld [vmem:[%s1 + $0x10] sm:$0xff]
  %v19 = vld [vmem:[%s1 + $0x18] sm:$0xff]
  %v20 = vld [vmem:[%s1 + $0x20] sm:$0xff]
  %v21 = vld [vmem:[%s1 + $0x28] sm:$0xff]
  %v22 = vld [vmem:[%s1 + $0x30] sm:$0xff]
  %v23 = vld [vmem:[%s1 + $0x38] sm:$0xff]
  %v24 = vld [vmem:[%s1 + $0x40] sm:$0xff]
  %v25 = vpack.c.bf16 %v18, %v17
  %v26 = vpack.c.bf16 %v20, %v19
  %v27 = vpack.c.bf16 %v22, %v21
  %v28 = vpack.c.bf16 %v24, %v23
  %v29 = vld [vmem:[%s1 + $0x48] sm:$0xff]
  %v30 = vld [vmem:[%s1 + $0x50] sm:$0xff]
  %v31 = vld [vmem:[%s1 + $0x58] sm:$0xff]
  %v32 = vld [vmem:[%s1 + $0x60] sm:$0xff]
  %v33 = vld [vmem:[%s1 + $0x68] sm:$0xff]
  %v34 = vld [vmem:[%s1 + $0x70] sm:$0xff]
  %v35 = vld [vmem:[%s1 + $0x78] sm:$0xff]
  %v36 = vld [vmem:[%s1 + $0x80] sm:$0xff]
  %v37 = vpack.c.bf16 %v30, %v29
  %v38 = vpack.c.bf16 %v32, %v31
  %v39 = vpack.c.bf16 %v34, %v33
  %v40 = vpack.c.bf16 %v36, %v35
  %v41 = vld [vmem:[%s1 + $0x88] sm:$0xff]
  %v42 = vld [vmem:[%s1 + $0x90] sm:$0xff]
  %v43 = vld [vmem:[%s1 + $0x98] sm:$0xff]
  %v44 = vld [vmem:[%s1 + $0xa0] sm:$0xff]
  %v45 = vld [vmem:[%s1 + $0xa8] sm:$0xff]
  %v46 = vld [vmem:[%s1 + $0xb0] sm:$0xff]
  %v47 = vld [vmem:[%s1 + $0xb8] sm:$0xff]
  %v48 = vld [vmem:[%s1 + $0xc0] sm:$0xff]
  %v49 = vpack.c.bf16 %v42, %v41
  %v50 = vpack.c.bf16 %v44, %v43
  %v51 = vpack.c.bf16 %v46, %v45
  %v52 = vpack.c.bf16 %v48, %v47
  %v53 = vld [vmem:[%s1 + $0xc8] sm:$0x1]
  %v54 = vld [vmem:[%s1 + $0xc9] sm:$0x1]
  %v55 = vperm.slane %v54, 0
  %v56 = vld [vmem:[%s0] sm:$0xff]
  %v57 = vld [vmem:[%s0 + $0x8] sm:$0xff]
  %v58 = vld [vmem:[%s0 + $0x10] sm:$0xff]
  %v59 = vld [vmem:[%s0 + $0x18] sm:$0xff]
  %v60 = vld [vmem:[%s0 + $0x20] sm:$0xff]
  %v61 = vld [vmem:[%s0 + $0x28] sm:$0xff]
  %v62 = vld [vmem:[%s0 + $0x30] sm:$0xff]
  %v63 = vld [vmem:[%s0 + $0x38] sm:$0xff]
  %v64 = vpack.c.bf16 %v57, %v56
  %v65 = vpack.c.bf16 %v59, %v58
  %v66 = vpack.c.bf16 %v61, %v60
  %v67 = vpack.c.bf16 %v63, %v62
  %v68 = vperm.slane %v53, 0
  %vm69 = vcmask 64512
  %v71 = vsel %vm69, %v64, 0
  %v74 = vsel %vm69, %v65, 0
  %v77 = vsel %vm69, %v66, 0
  %v80 = vsel %vm69, %v67, 0
  %vm82 = vcmask 1043456
  %v84 = vsel %vm82, %v16, 0
  %86 = vmatpush.bf16.msra.mxu0 0
  %87 = vmatpush.bf16.msra.mxu0 0
  %88 = vmatpush.bf16.msra.mxu0 0
  %89 = vmatpush.bf16.msra.mxu0 0
  %90 = vmatpush.bf16.msra.mxu0 0
  %91 = vmatpush.bf16.msra.mxu0 0
  %92 = vmatpush.bf16.msra.mxu0 0
  %93 = vmatpush.bf16.msra.mxu0 %v84
  %94 = vmatmul.bf16.gmra.mxu0 %v71
  %v95 = vpop.f32.mrf.mxu0
  %v96 = vadd.f32 %v68, %v95
  %v97 = vpop.f32.mrf.mxu0
  %v98 = vadd.f32 %v68, %v97
  %99 = vmatmul.bf16.gmra.mxu0 %v74
  %v100 = vpop.f32.mrf.mxu0
  %v101 = vadd.f32 %v68, %v100
  %v102 = vpop.f32.mrf.mxu0
  %v103 = vadd.f32 %v68, %v102
  %104 = vmatmul.bf16.gmra.mxu0 %v77
  %v105 = vpop.f32.mrf.mxu0
  %v106 = vadd.f32 %v68, %v105
  %v107 = vpop.f32.mrf.mxu0
  %v108 = vadd.f32 %v68, %v107
  %109 = vmatmul.bf16.gmra.mxu0 %v80
  %v110 = vpop.f32.mrf.mxu0
  %v111 = vadd.f32 %v68, %v110
  %v112 = vpop.f32.mrf.mxu0
  %v113 = vadd.f32 %v68, %v112
  %114 = vdwg.mxu0
  %vm115 = vcmask 523264
  %116 = vst.msk [vmem:[#allocation2] sm:$0xff] %vm115, %v96
  %117 = vst.msk [vmem:[#allocation2 + $0x8] sm:$0xff] %vm115, %v98
  %118 = vst.msk [vmem:[#allocation2 + $0x10] sm:$0xff] %vm115, %v101
  %119 = vst.msk [vmem:[#allocation2 + $0x18] sm:$0xff] %vm115, %v103
  %120 = vst.msk [vmem:[#allocation2 + $0x20] sm:$0xff] %vm115, %v106
  %121 = vst.msk [vmem:[#allocation2 + $0x28] sm:$0xff] %vm115, %v108
  %122 = vst.msk [vmem:[#allocation2 + $0x30] sm:$0xff] %vm115, %v111
  %123 = vst.msk [vmem:[#allocation2 + $0x38] sm:$0xff] %vm115, %v113
  %v124 = vld [vmem:[#allocation2] sm:$0xff]
  %v126 = vsel %vm115, 0, 0
  %128 = vmatpush.bf16.msra.mxu0 0
  %129 = vmatpush.bf16.msra.mxu0 0
  %130 = vmatpush.bf16.msra.mxu0 0
  %131 = vmatpush.bf16.msra.mxu0 0
  %132 = vmatpush.bf16.msra.mxu0 %v28
  %133 = vmatpush.bf16.msra.mxu0 %v27
  %134 = vmatpush.bf16.msra.mxu0 %v26
  %135 = vmatpush.bf16.msra.mxu0 %v25
  %136 = vmatmul.bf16.gmra.mxu0 %v126
  %v137 = vpop.f32.mrf.mxu0
  %v138 = vadd.f32 0.0, %v137
  %v139 = vpop.f32.mrf.mxu0
  %140 = vdwg.mxu0
  %v141 = vadd.f32 %v124, %v138
  %v142 = vtanh.pop %v141
  %v143 = vpack.c.bf16 %v142, %v142
  %144 = vmatpush.bf16.msra.mxu0 0
  %145 = vmatpush.bf16.msra.mxu0 0
  %146 = vmatpush.bf16.msra.mxu0 0
  %147 = vmatpush.bf16.msra.mxu0 0
  %148 = vmatpush.bf16.msra.mxu0 %v52
  %149 = vmatpush.bf16.msra.mxu0 %v51
  %150 = vmatpush.bf16.msra.mxu0 %v50
  %151 = vmatpush.bf16.msra.mxu0 %v49
  %152 = vmatmul.bf16.gmra.mxu0 %v126
  %v153 = vpop.f32.mrf.mxu0
  %v154 = vadd.f32 0.0, %v153
  %v155 = vpop.f32.mrf.mxu0
  %156 = vdwg.mxu0
  %v158 = vsel %vm115, %v143, 0
  %160 = vmatpush.bf16.msra.mxu0 0
  %161 = vmatpush.bf16.msra.mxu0 0
  %162 = vmatpush.bf16.msra.mxu0 0
  %163 = vmatpush.bf16.msra.mxu0 0
  %164 = vmatpush.bf16.msra.mxu0 %v40
  %165 = vmatpush.bf16.msra.mxu0 %v39
  %166 = vmatpush.bf16.msra.mxu0 %v38
  %167 = vmatpush.bf16.msra.mxu0 %v37
  %168 = vmatmul.bf16.gmra.mxu0 %v158
  %v169 = vpop.f32.mrf.mxu0
  %v170 = vadd.f32 %v154, %v169
  %v171 = vpop.f32.mrf.mxu0
  %172 = vdwg.mxu0
  %v173 = vadd.f32 %v170, %v55
  %v174 = vtanh.pop %v173
  %s175 = scalar_lea.vmem [#allocation2], 8
  %v176 = vld [vmem:[%s175] sm:$0xff]
  %177 = vmatpush.bf16.msra.mxu0 0
  %178 = vmatpush.bf16.msra.mxu0 0
  %179 = vmatpush.bf16.msra.mxu0 0
  %180 = vmatpush.bf16.msra.mxu0 0
  %181 = vmatpush.bf16.msra.mxu0 %v28
  %182 = vmatpush.bf16.msra.mxu0 %v27
  %183 = vmatpush.bf16.msra.mxu0 %v26
  %184 = vmatpush.bf16.msra.mxu0 %v25
  %185 = vmatmul.bf16.gmra.mxu0 %v158
  %v186 = vpop.f32.mrf.mxu0
  %v187 = vadd.f32 0.0, %v186
  %v188 = vpop.f32.mrf.mxu0
  %189 = vdwg.mxu0
  %v190 = vadd.f32 %v176, %v187
  %v191 = vtanh.pop %v190
  %v192 = vpack.c.bf16 %v191, %v191
  %v193 = vpack.c.bf16 %v174, %v174
  %v195 = vsel %vm115, %v193, 0
  %197 = vmatpush.bf16.msra.mxu0 0
  %198 = vmatpush.bf16.msra.mxu0 0
  %199 = vmatpush.bf16.msra.mxu0 0
  %200 = vmatpush.bf16.msra.mxu0 0
  %201 = vmatpush.bf16.msra.mxu0 %v52
  %202 = vmatpush.bf16.msra.mxu0 %v51
  %203 = vmatpush.bf16.msra.mxu0 %v50
  %204 = vmatpush.bf16.msra.mxu0 %v49
  %205 = vmatmul.bf16.gmra.mxu0 %v195
  %v206 = vpop.f32.mrf.mxu0
  %v207 = vadd.f32 0.0, %v206
  %v208 = vpop.f32.mrf.mxu0
  %209 = vdwg.mxu0
  %v211 = vsel %vm115, %v192, 0
  %213 = vmatpush.bf16.msra.mxu0 0
  %214 = vmatpush.bf16.msra.mxu0 0
  %215 = vmatpush.bf16.msra.mxu0 0
  %216 = vmatpush.bf16.msra.mxu0 0
  %217 = vmatpush.bf16.msra.mxu0 %v40
  %218 = vmatpush.bf16.msra.mxu0 %v39
  %219 = vmatpush.bf16.msra.mxu0 %v38
  %220 = vmatpush.bf16.msra.mxu0 %v37
  %221 = vmatmul.bf16.gmra.mxu0 %v211
  %v222 = vpop.f32.mrf.mxu0
  %v223 = vadd.f32 %v207, %v222
  %v224 = vpop.f32.mrf.mxu0
  %225 = vdwg.mxu0
  %v226 = vadd.f32 %v223, %v55
  %v227 = vtanh.pop %v226
  %s228 = scalar_lea.vmem [#allocation2], 16
  %v229 = vld [vmem:[%s228] sm:$0xff]
  %230 = vmatpush.bf16.msra.mxu0 0
  %231 = vmatpush.bf16.msra.mxu0 0
  %232 = vmatpush.bf16.msra.mxu0 0
  %233 = vmatpush.bf16.msra.mxu0 0
  %234 = vmatpush.bf16.msra.mxu0 %v28
  %235 = vmatpush.bf16.msra.mxu0 %v27
  %236 = vmatpush.bf16.msra.mxu0 %v26
  %237 = vmatpush.bf16.msra.mxu0 %v25
  %238 = vmatmul.bf16.gmra.mxu0 %v211
  %v239 = vpop.f32.mrf.mxu0
  %v240 = vadd.f32 0.0, %v239
  %v241 = vpop.f32.mrf.mxu0
  %242 = vdwg.mxu0
  %v243 = vadd.f32 %v229, %v240
  %v244 = vtanh.pop %v243
  %v245 = vpack.c.bf16 %v244, %v244
  %v246 = vpack.c.bf16 %v227, %v227
  %v248 = vsel %vm115, %v246, 0
  %250 = vmatpush.bf16.msra.mxu0 0
  %251 = vmatpush.bf16.msra.mxu0 0
  %252 = vmatpush.bf16.msra.mxu0 0
  %253 = vmatpush.bf16.msra.mxu0 0
  %254 = vmatpush.bf16.msra.mxu0 %v52
  %255 = vmatpush.bf16.msra.mxu0 %v51
  %256 = vmatpush.bf16.msra.mxu0 %v50
  %257 = vmatpush.bf16.msra.mxu0 %v49
  %258 = vmatmul.bf16.gmra.mxu0 %v248
  %v259 = vpop.f32.mrf.mxu0
  %v260 = vadd.f32 0.0, %v259
  %v261 = vpop.f32.mrf.mxu0
  %262 = vdwg.mxu0
  %v264 = vsel %vm115, %v245, 0
  %266 = vmatpush.bf16.msra.mxu0 0
  %267 = vmatpush.bf16.msra.mxu0 0
  %268 = vmatpush.bf16.msra.mxu0 0
  %269 = vmatpush.bf16.msra.mxu0 0
  %270 = vmatpush.bf16.msra.mxu0 %v40
  %271 = vmatpush.bf16.msra.mxu0 %v39
  %272 = vmatpush.bf16.msra.mxu0 %v38
  %273 = vmatpush.bf16.msra.mxu0 %v37
  %274 = vmatmul.bf16.gmra.mxu0 %v264
  %v275 = vpop.f32.mrf.mxu0
  %v276 = vadd.f32 %v260, %v275
  %v277 = vpop.f32.mrf.mxu0
  %278 = vdwg.mxu0
  %v279 = vadd.f32 %v276, %v55
  %v280 = vtanh.pop %v279
  %s281 = scalar_lea.vmem [#allocation2], 24
  %v282 = vld [vmem:[%s281] sm:$0xff]
  %283 = vmatpush.bf16.msra.mxu0 0
  %284 = vmatpush.bf16.msra.mxu0 0
  %285 = vmatpush.bf16.msra.mxu0 0
  %286 = vmatpush.bf16.msra.mxu0 0
  %287 = vmatpush.bf16.msra.mxu0 %v28
  %288 = vmatpush.bf16.msra.mxu0 %v27
  %289 = vmatpush.bf16.msra.mxu0 %v26
  %290 = vmatpush.bf16.msra.mxu0 %v25
  %291 = vmatmul.bf16.gmra.mxu0 %v264
  %v292 = vpop.f32.mrf.mxu0
  %v293 = vadd.f32 0.0, %v292
  %v294 = vpop.f32.mrf.mxu0
  %295 = vdwg.mxu0
  %v296 = vadd.f32 %v282, %v293
  %v297 = vtanh.pop %v296
  %v298 = vpack.c.bf16 %v297, %v297
  %v299 = vpack.c.bf16 %v280, %v280
  %v301 = vsel %vm115, %v299, 0
  %303 = vmatpush.bf16.msra.mxu0 0
  %304 = vmatpush.bf16.msra.mxu0 0
  %305 = vmatpush.bf16.msra.mxu0 0
  %306 = vmatpush.bf16.msra.mxu0 0
  %307 = vmatpush.bf16.msra.mxu0 %v52
  %308 = vmatpush.bf16.msra.mxu0 %v51
  %309 = vmatpush.bf16.msra.mxu0 %v50
  %310 = vmatpush.bf16.msra.mxu0 %v49
  %311 = vmatmul.bf16.gmra.mxu0 %v301
  %v312 = vpop.f32.mrf.mxu0
  %v313 = vadd.f32 0.0, %v312
  %v314 = vpop.f32.mrf.mxu0
  %315 = vdwg.mxu0
  %v317 = vsel %vm115, %v298, 0
  %319 = vmatpush.bf16.msra.mxu0 0
  %320 = vmatpush.bf16.msra.mxu0 0
  %321 = vmatpush.bf16.msra.mxu0 0
  %322 = vmatpush.bf16.msra.mxu0 0
  %323 = vmatpush.bf16.msra.mxu0 %v40
  %324 = vmatpush.bf16.msra.mxu0 %v39
  %325 = vmatpush.bf16.msra.mxu0 %v38
  %326 = vmatpush.bf16.msra.mxu0 %v37
  %327 = vmatmul.bf16.gmra.mxu0 %v317
  %v328 = vpop.f32.mrf.mxu0
  %v329 = vadd.f32 %v313, %v328
  %v330 = vpop.f32.mrf.mxu0
  %331 = vdwg.mxu0
  %v332 = vadd.f32 %v329, %v55
  %v333 = vtanh.pop %v332
  %s334 = scalar_lea.vmem [#allocation2], 32
  %v335 = vld [vmem:[%s334] sm:$0xff]
  %336 = vmatpush.bf16.msra.mxu0 0
  %337 = vmatpush.bf16.msra.mxu0 0
  %338 = vmatpush.bf16.msra.mxu0 0
  %339 = vmatpush.bf16.msra.mxu0 0
  %340 = vmatpush.bf16.msra.mxu0 %v28
  %341 = vmatpush.bf16.msra.mxu0 %v27
  %342 = vmatpush.bf16.msra.mxu0 %v26
  %343 = vmatpush.bf16.msra.mxu0 %v25
  %344 = vmatmul.bf16.gmra.mxu0 %v317
  %v345 = vpop.f32.mrf.mxu0
  %v346 = vadd.f32 0.0, %v345
  %v347 = vpop.f32.mrf.mxu0
  %348 = vdwg.mxu0
  %v349 = vadd.f32 %v335, %v346
  %v350 = vtanh.pop %v349
  %v351 = vpack.c.bf16 %v350, %v350
  %v352 = vpack.c.bf16 %v333, %v333
  %v354 = vsel %vm115, %v352, 0
  %356 = vmatpush.bf16.msra.mxu0 0
  %357 = vmatpush.bf16.msra.mxu0 0
  %358 = vmatpush.bf16.msra.mxu0 0
  %359 = vmatpush.bf16.msra.mxu0 0
  %360 = vmatpush.bf16.msra.mxu0 %v52
  %361 = vmatpush.bf16.msra.mxu0 %v51
  %362 = vmatpush.bf16.msra.mxu0 %v50
  %363 = vmatpush.bf16.msra.mxu0 %v49
  %364 = vmatmul.bf16.gmra.mxu0 %v354
  %v365 = vpop.f32.mrf.mxu0
  %v366 = vadd.f32 0.0, %v365
  %v367 = vpop.f32.mrf.mxu0
  %368 = vdwg.mxu0
  %v370 = vsel %vm115, %v351, 0
  %372 = vmatpush.bf16.msra.mxu0 0
  %373 = vmatpush.bf16.msra.mxu0 0
  %374 = vmatpush.bf16.msra.mxu0 0
  %375 = vmatpush.bf16.msra.mxu0 0
  %376 = vmatpush.bf16.msra.mxu0 %v40
  %377 = vmatpush.bf16.msra.mxu0 %v39
  %378 = vmatpush.bf16.msra.mxu0 %v38
  %379 = vmatpush.bf16.msra.mxu0 %v37
  %380 = vmatmul.bf16.gmra.mxu0 %v370
  %v381 = vpop.f32.mrf.mxu0
  %v382 = vadd.f32 %v366, %v381
  %v383 = vpop.f32.mrf.mxu0
  %384 = vdwg.mxu0
  %v385 = vadd.f32 %v382, %v55
  %v386 = vtanh.pop %v385
  %s387 = scalar_lea.vmem [#allocation2], 40
  %v388 = vld [vmem:[%s387] sm:$0xff]
  %389 = vmatpush.bf16.msra.mxu0 0
  %390 = vmatpush.bf16.msra.mxu0 0
  %391 = vmatpush.bf16.msra.mxu0 0
  %392 = vmatpush.bf16.msra.mxu0 0
  %393 = vmatpush.bf16.msra.mxu0 %v28
  %394 = vmatpush.bf16.msra.mxu0 %v27
  %395 = vmatpush.bf16.msra.mxu0 %v26
  %396 = vmatpush.bf16.msra.mxu0 %v25
  %397 = vmatmul.bf16.gmra.mxu0 %v370
  %v398 = vpop.f32.mrf.mxu0
  %v399 = vadd.f32 0.0, %v398
  %v400 = vpop.f32.mrf.mxu0
  %401 = vdwg.mxu0
  %v402 = vadd.f32 %v388, %v399
  %v403 = vtanh.pop %v402
  %v404 = vpack.c.bf16 %v403, %v403
  %v405 = vpack.c.bf16 %v386, %v386
  %v407 = vsel %vm115, %v405, 0
  %409 = vmatpush.bf16.msra.mxu0 0
  %410 = vmatpush.bf16.msra.mxu0 0
  %411 = vmatpush.bf16.msra.mxu0 0
  %412 = vmatpush.bf16.msra.mxu0 0
  %413 = vmatpush.bf16.msra.mxu0 %v52
  %414 = vmatpush.bf16.msra.mxu0 %v51
  %415 = vmatpush.bf16.msra.mxu0 %v50
  %416 = vmatpush.bf16.msra.mxu0 %v49
  %417 = vmatmul.bf16.gmra.mxu0 %v407
  %v418 = vpop.f32.mrf.mxu0
  %v419 = vadd.f32 0.0, %v418
  %v420 = vpop.f32.mrf.mxu0
  %421 = vdwg.mxu0
  %v423 = vsel %vm115, %v404, 0
  %425 = vmatpush.bf16.msra.mxu0 0
  %426 = vmatpush.bf16.msra.mxu0 0
  %427 = vmatpush.bf16.msra.mxu0 0
  %428 = vmatpush.bf16.msra.mxu0 0
  %429 = vmatpush.bf16.msra.mxu0 %v40
  %430 = vmatpush.bf16.msra.mxu0 %v39
  %431 = vmatpush.bf16.msra.mxu0 %v38
  %432 = vmatpush.bf16.msra.mxu0 %v37
  %433 = vmatmul.bf16.gmra.mxu0 %v423
  %v434 = vpop.f32.mrf.mxu0
  %v435 = vadd.f32 %v419, %v434
  %v436 = vpop.f32.mrf.mxu0
  %437 = vdwg.mxu0
  %v438 = vadd.f32 %v435, %v55
  %v439 = vtanh.pop %v438
  %s440 = scalar_lea.vmem [#allocation2], 48
  %v441 = vld [vmem:[%s440] sm:$0xff]
  %442 = vmatpush.bf16.msra.mxu0 0
  %443 = vmatpush.bf16.msra.mxu0 0
  %444 = vmatpush.bf16.msra.mxu0 0
  %445 = vmatpush.bf16.msra.mxu0 0
  %446 = vmatpush.bf16.msra.mxu0 %v28
  %447 = vmatpush.bf16.msra.mxu0 %v27
  %448 = vmatpush.bf16.msra.mxu0 %v26
  %449 = vmatpush.bf16.msra.mxu0 %v25
  %450 = vmatmul.bf16.gmra.mxu0 %v423
  %v451 = vpop.f32.mrf.mxu0
  %v452 = vadd.f32 0.0, %v451
  %v453 = vpop.f32.mrf.mxu0
  %454 = vdwg.mxu0
  %v455 = vadd.f32 %v441, %v452
  %v456 = vtanh.pop %v455
  %v457 = vpack.c.bf16 %v456, %v456
  %v458 = vpack.c.bf16 %v439, %v439
  %v460 = vsel %vm115, %v458, 0
  %462 = vmatpush.bf16.msra.mxu0 0
  %463 = vmatpush.bf16.msra.mxu0 0
  %464 = vmatpush.bf16.msra.mxu0 0
  %465 = vmatpush.bf16.msra.mxu0 0
  %466 = vmatpush.bf16.msra.mxu0 %v52
  %467 = vmatpush.bf16.msra.mxu0 %v51
  %468 = vmatpush.bf16.msra.mxu0 %v50
  %469 = vmatpush.bf16.msra.mxu0 %v49
  %470 = vmatmul.bf16.gmra.mxu0 %v460
  %v471 = vpop.f32.mrf.mxu0
  %v472 = vadd.f32 0.0, %v471
  %v473 = vpop.f32.mrf.mxu0
  %474 = vdwg.mxu0
  %v476 = vsel %vm115, %v457, 0
  %478 = vmatpush.bf16.msra.mxu0 0
  %479 = vmatpush.bf16.msra.mxu0 0
  %480 = vmatpush.bf16.msra.mxu0 0
  %481 = vmatpush.bf16.msra.mxu0 0
  %482 = vmatpush.bf16.msra.mxu0 %v40
  %483 = vmatpush.bf16.msra.mxu0 %v39
  %484 = vmatpush.bf16.msra.mxu0 %v38
  %485 = vmatpush.bf16.msra.mxu0 %v37
  %486 = vmatmul.bf16.gmra.mxu0 %v476
  %v487 = vpop.f32.mrf.mxu0
  %v488 = vadd.f32 %v472, %v487
  %v489 = vpop.f32.mrf.mxu0
  %490 = vdwg.mxu0
  %v491 = vadd.f32 %v488, %v55
  %v492 = vtanh.pop %v491
  %s493 = scalar_lea.vmem [#allocation2], 56
  %v494 = vld [vmem:[%s493] sm:$0xff]
  %495 = vmatpush.bf16.msra.mxu0 0
  %496 = vmatpush.bf16.msra.mxu0 0
  %497 = vmatpush.bf16.msra.mxu0 0
  %498 = vmatpush.bf16.msra.mxu0 0
  %499 = vmatpush.bf16.msra.mxu0 %v28
  %500 = vmatpush.bf16.msra.mxu0 %v27
  %501 = vmatpush.bf16.msra.mxu0 %v26
  %502 = vmatpush.bf16.msra.mxu0 %v25
  %503 = vmatmul.bf16.gmra.mxu0 %v476
  %v504 = vpop.f32.mrf.mxu0
  %v505 = vadd.f32 0.0, %v504
  %v506 = vpop.f32.mrf.mxu0
  %507 = vdwg.mxu0
  %v508 = vadd.f32 %v494, %v505
  %v509 = vtanh.pop %v508
  %v510 = vpack.c.bf16 %v509, %v509
  %v511 = vpack.c.bf16 %v492, %v492
  %v513 = vsel %vm115, %v511, 0
  %515 = vmatpush.bf16.msra.mxu0 0
  %516 = vmatpush.bf16.msra.mxu0 0
  %517 = vmatpush.bf16.msra.mxu0 0
  %518 = vmatpush.bf16.msra.mxu0 0
  %519 = vmatpush.bf16.msra.mxu0 %v52
  %520 = vmatpush.bf16.msra.mxu0 %v51
  %521 = vmatpush.bf16.msra.mxu0 %v50
  %522 = vmatpush.bf16.msra.mxu0 %v49
  %523 = vmatmul.bf16.gmra.mxu0 %v513
  %v524 = vpop.f32.mrf.mxu0
  %v525 = vadd.f32 0.0, %v524
  %v526 = vpop.f32.mrf.mxu0
  %527 = vdwg.mxu0
  %v529 = vsel %vm115, %v510, 0
  %531 = vmatpush.bf16.msra.mxu0 0
  %532 = vmatpush.bf16.msra.mxu0 0
  %533 = vmatpush.bf16.msra.mxu0 0
  %534 = vmatpush.bf16.msra.mxu0 0
  %535 = vmatpush.bf16.msra.mxu0 %v40
  %536 = vmatpush.bf16.msra.mxu0 %v39
  %537 = vmatpush.bf16.msra.mxu0 %v38
  %538 = vmatpush.bf16.msra.mxu0 %v37
  %539 = vmatmul.bf16.gmra.mxu0 %v529
  %v540 = vpop.f32.mrf.mxu0
  %v541 = vadd.f32 %v525, %v540
  %v542 = vpop.f32.mrf.mxu0
  %543 = vdwg.mxu0
  %v544 = vadd.f32 %v541, %v55
  %v545 = vtanh.pop %v544
  %v546 = vld [vmem:[%s2] sm:$0xff]
  %v547 = vld [vmem:[%s2 + $0x8] sm:$0xff]
  %v548 = vld [vmem:[%s2 + $0x10] sm:$0xff]
  %v549 = vld [vmem:[%s2 + $0x18] sm:$0xff]
  %v550 = vld [vmem:[%s2 + $0x20] sm:$0xff]
  %v551 = vld [vmem:[%s2 + $0x28] sm:$0xff]
  %v552 = vld [vmem:[%s2 + $0x30] sm:$0xff]
  %v553 = vld [vmem:[%s2 + $0x38] sm:$0xff]
  %v554 = vpack.c.bf16 %v547, %v546
  %v555 = vpack.c.bf16 %v549, %v548
  %v556 = vpack.c.bf16 %v551, %v550
  %v557 = vpack.c.bf16 %v553, %v552
  %v558 = vld [vmem:[%s2 + $0x40] sm:$0x1]
  %v559 = vpack.c.bf16 %v545, %v545
  %v560 = vperm.slane %v558, 0
  %v562 = vsel %vm115, %v559, 0
  %564 = vmatpush.bf16.msra.mxu0 0
  %565 = vmatpush.bf16.msra.mxu0 0
  %566 = vmatpush.bf16.msra.mxu0 0
  %567 = vmatpush.bf16.msra.mxu0 0
  %568 = vmatpush.bf16.msra.mxu0 %v557
  %569 = vmatpush.bf16.msra.mxu0 %v556
  %570 = vmatpush.bf16.msra.mxu0 %v555
  %571 = vmatpush.bf16.msra.mxu0 %v554
  %572 = vmatmul.bf16.gmra.mxu0 %v562
  %v573 = vpop.f32.mrf.mxu0
  %v574 = vadd.f32 %v560, %v573
  %v575 = vpop.f32.mrf.mxu0
  %576 = vdwg.mxu0
  %577 = vst [vmem:[%s3] sm:$0xff] %v574
  // Predicated region
  $region14: #{vanilla_rnn_forward.1} parent=0 // pred_check
    _
  $region15: #{vanilla_rnn_forward.1} parent=0 // pred_check_branch
    %579 = sbr.rel (0) target = $region17
  $region16: #{vanilla_rnn_forward.1} parent=0 // pred_region
    _
  $region17: #{vanilla_rnn_forward.1} parent=0 // pred_fallthru
    _
  // Predicated region
  $region18: #{vanilla_rnn_forward.1} parent=0 // pred_check
    _
  $region19: #{vanilla_rnn_forward.1} parent=0 // pred_check_branch
    %581 = sbr.rel (0) target = $region21
  $region20: #{vanilla_rnn_forward.1} parent=0 // pred_region
    _
  $region21: #{vanilla_rnn_forward.1} parent=0 // pred_fallthru
    _

</llo_original>
